<compile_context>
chip_gen: v6e
topology: v6e:2x2x1
jax: 0.10.0
libtpu: 0.0.40
codegen_flags: <defaults>
</compile_context>

<pallas_src>
import jax
import jax.numpy as jnp
from jax.experimental import pallas as pl
from jax.experimental.pallas import tpu as pltpu

BN_EPS = 1e-5


def _make_kernel(tb, c, oup, h, w):
    inv_w = 1.0 / float(w)
    inv_h = 1.0 / float(h)

    def kernel(x_ref, eht_ref, ewt_ref, eh_ref, ew_ref,
               w1_ref, b1_ref, wh_ref, bh_ref, ww_ref, bw_ref, out_ref):
        # x_ref:   (tb*C, HW)   lane-dense, batch-fused tile (native dtype, no upcast)
        # eht/ewt: (HW, H)/(HW, W)  pre-transposed 0/1 selectors -> pooling MXU feed
        # eh/ew:   (H, HW)/(W, HW)  selectors for the final broadcast-back
        # out_ref: (tb*oup, HW)  lane-dense output tile (single store per step)
        x = x_ref[...]
        eht = eht_ref[...]
        ewt = ewt_ref[...]

        # Coordinate pooling for all tb batch elements in ONE matmul each
        # (M = tb*C): x @ Eh^T / W == mean over W, x @ Ew^T / H == mean over H.
        # Native-dtype MXU operands, f32 accumulation.
        x_h = jnp.dot(x, eht, preferred_element_type=jnp.float32) * inv_w   # (tb*C, H)
        x_w = jnp.dot(x, ewt, preferred_element_type=jnp.float32) * inv_h   # (tb*C, W)

        w1 = w1_ref[...]          # BN-folded conv1 weight (mip, C)
        wh = wh_ref[...]
        ww = ww_ref[...]
        mip = w1.shape[0]
        # Hoist bias broadcasts out of the unroll (JAX does not CSE broadcast_in_dim).
        b1_h = jnp.broadcast_to(b1_ref[...], (mip, h))
        b1_w = jnp.broadcast_to(b1_ref[...], (mip, w))
        bh_h = jnp.broadcast_to(bh_ref[...], (oup, h))
        bw_w = jnp.broadcast_to(bw_ref[...], (oup, w))

        a_h_parts = []
        a_w_parts = []
        for b in range(tb):   # tiny channel-mixing matmuls; tb capped by the picker
            xh_b = x_h[b * c:(b + 1) * c]                                   # (C, H)
            xw_b = x_w[b * c:(b + 1) * c]                                   # (C, W)
            # conv1 (1x1 conv == channel matmul, BatchNorm pre-folded) + h_swish.
            yh = jnp.dot(w1, xh_b, preferred_element_type=jnp.float32) + b1_h
            yw = jnp.dot(w1, xw_b, preferred_element_type=jnp.float32) + b1_w
            yh = yh * jnp.clip(yh + 3.0, 0.0, 6.0) * (1.0 / 6.0)
            yw = yw * jnp.clip(yw + 3.0, 0.0, 6.0) * (1.0 / 6.0)
            # conv_h / conv_w (1x1 convs).
            a_h_parts.append(jnp.dot(wh, yh, preferred_element_type=jnp.float32) + bh_h)
            a_w_parts.append(jnp.dot(ww, yw, preferred_element_type=jnp.float32) + bw_w)

        a_h = a_h_parts[0] if tb == 1 else jnp.concatenate(a_h_parts, axis=0)  # (tb*oup, H)
        a_w = a_w_parts[0] if tb == 1 else jnp.concatenate(a_w_parts, axis=0)  # (tb*oup, W)

        # Broadcast back to the full lane-dense (tb*oup, HW) map with two
        # batch-fused matmuls (a_h @ Eh repeats each H value W times, a_w @ Ew
        # tiles the W profile H times), sigmoid, ONE unmasked store.
        eh = eh_ref[...]
        ew = ew_ref[...]
        out = jax.nn.sigmoid(
            jnp.dot(a_h.astype(eh.dtype), eh, preferred_element_type=jnp.float32)
            + jnp.dot(a_w.astype(ew.dtype), ew, preferred_element_type=jnp.float32))
        out_ref[...] = out.astype(out_ref.dtype)

    return kernel


def _vmem_budget_bytes():
    """Chip-aware VMEM limit: ~96 MiB on 128-MiB chips (v5e/v6e), ~48 MiB on v7x."""
    phys = 0
    try:
        phys = int(getattr(pltpu.get_tpu_info(), "vmem_capacity_bytes", 0))
    except Exception:
        phys = 0
    if phys <= 0:
        return 48 * 2**20          # safe fallback on every generation
    return min(96 * 2**20, (phys * 3) // 4)


def _pick_tb(n, c, oup, hw, itemsize, tile_budget,
             target_bytes=2 * 2**20, max_tb=32):
    """Bytes-based per-step batch tile: grow tb until the in+out tile reaches
    ~target_bytes (HBM/step-overhead bound kernel), subject to the VMEM budget,
    (8,·)-legal block shapes, and a cap on the static channel-mixing unroll.
    Prefers an even grid when the grid is split (v7x 2-TC load balance)."""
    def tile_bytes(tb):
        return tb * hw * itemsize * (c + oup)

    cands = []
    for tb in range(1, min(n, max_tb) + 1):
        if n % tb:
            continue
        # (8,128) block legality: sublane dim multiple of 8 unless block == full dim.
        if tb != n and ((tb * c) % 8 or (tb * oup) % 8):
            continue
        if 2 * tile_bytes(tb) > tile_budget:      # double-buffered in + out
            continue
        cands.append(tb)
    if not cands:
        return n          # full-batch fallback: blocks equal full dims (always legal)

    reaching = [t for t in cands if tile_bytes(t) >= target_bytes]
    tb = min(reaching) if reaching else max(cands)

    # v7x: the batch grid is sharded across 2 TensorCores; prefer an even grid
    # among similar-size candidates to avoid ~33% load imbalance.
    if n // tb > 1 and (n // tb) % 2:
        evens = [t for t in cands
                 if (n // t) % 2 == 0 and 2 * tile_bytes(t) >= tile_bytes(tb)]
        if evens:
            tb = min(evens, key=lambda t: abs(t - tb))
    return tb


def prepare_params(raw):
    """One-time host-side prep: fold eval-mode BatchNorm into conv1."""
    scale = raw["gamma"] / jnp.sqrt(raw["var"] + BN_EPS)           # (mip, 1)
    return {
        "w1": raw["w1"] * scale,                                   # (mip, C)
        "b1": (raw["b1"] - raw["mean"]) * scale + raw["beta"],     # (mip, 1)
        "wh": raw["wh"], "bh": raw["bh"],
        "ww": raw["ww"], "bw": raw["bw"],
    }


def coord_att(x, params, tb=None):
    n, c, h, w = x.shape
    hw = h * w
    oup = params["wh"].shape[0]
    itemsize = jnp.dtype(x.dtype).itemsize

    budget = _vmem_budget_bytes()
    if tb is None:
        tb = _pick_tb(n, c, oup, hw, itemsize, tile_budget=budget // 2)
    assert n % tb == 0, "batch must be divisible by the per-step tile tb"

    # Selectors are exact 0/1, so they can match x's compute dtype (bf16 when x
    # is bf16 -> native bf16 MXU feeds; f32 inputs keep f32 selectors so no
    # precision is lost on the means).
    sel_dtype = jnp.bfloat16 if x.dtype == jnp.bfloat16 else jnp.float32
    eh_f = jnp.repeat(jnp.eye(h, dtype=jnp.float32), w, axis=1)    # (H, HW): k//W == i
    ew_f = jnp.tile(jnp.eye(w, dtype=jnp.float32), (1, h))         # (W, HW): k% W == j
    eht = eh_f.T.astype(sel_dtype)      # (HW, H)  pre-transposed pooling feed
    ewt = ew_f.T.astype(sel_dtype)      # (HW, W)
    eh = eh_f.astype(sel_dtype)         # (H, HW)  broadcast-back feed
    ew = ew_f.astype(sel_dtype)         # (W, HW)
    # TODO(synk): for very large H*W, replace the O(HW*(H+W)) selector matmuls
    # with an in-kernel segmented reduction (matters once v7x HBM BW makes the
    # MXU the binding unit).

    # Metadata-only views: contiguous NCHW -> (N*C, HW) input, (N*oup, HW) output,
    # so DMA tiles and the output store are lane-dense for any C/oup.
    # TODO(synk): if HW is not a multiple of 128, optionally pad HW host-side
    # once (amortized across a network); the fused single store per step already
    # pays any masked-store cost only once per grid step.
    x_flat = x.reshape(n * c, hw)

    kernel = _make_kernel(tb, c, oup, h, w)

    def const_spec(arr):
        return pl.BlockSpec(arr.shape, lambda i: (0, 0))
    # TODO(synk): single-buffer the loop-invariant constants
    # (pipeline_mode=pl.Buffered(1)) to halve their VMEM footprint on v7x once
    # confirmed supported by the installed Pallas version.

    out_flat = pl.pallas_call(
        kernel,
        out_shape=jax.ShapeDtypeStruct((n * oup, hw), x.dtype),
        grid=(n // tb,),
        in_specs=[
            pl.BlockSpec((tb * c, hw), lambda i: (i, 0)),          # x (batch-fused tile)
            const_spec(eht), const_spec(ewt),                      # pooling selectors
            const_spec(eh), const_spec(ew),                        # broadcast selectors
            const_spec(params["w1"]), const_spec(params["b1"]),    # conv1 (BN folded)
            const_spec(params["wh"]), const_spec(params["bh"]),    # conv_h
            const_spec(params["ww"]), const_spec(params["bw"]),    # conv_w
        ],
        out_specs=pl.BlockSpec((tb * oup, hw), lambda i: (i, 0)),
        compiler_params=pltpu.CompilerParams(
            dimension_semantics=("parallel",),
            vmem_limit_bytes=int(budget)),
    )(x_flat, eht, ewt, eh, ew,
      params["w1"], params["b1"], params["wh"], params["bh"],
      params["ww"], params["bw"])

    return out_flat.reshape(n, oup, h, w)


def make_params(key, inp, oup, reduction=8):
    mip = max(8, inp // reduction)
    ks = jax.random.split(key, 8)
    return {
        "w1":    0.2 * jax.random.normal(ks[0], (mip, inp), jnp.float32),
        "b1":    0.1 * jax.random.normal(ks[1], (mip, 1), jnp.float32),
        "gamma": 1.0 + 0.1 * jax.random.normal(ks[2], (mip, 1), jnp.float32),
        "beta":  0.1 * jax.random.normal(ks[3], (mip, 1), jnp.float32),
        "mean":  0.05 * jax.random.normal(ks[4], (mip, 1), jnp.float32),
        "var":   1.0 + 0.1 * jnp.abs(jax.random.normal(ks[5], (mip, 1), jnp.float32)),
        "wh":    0.2 * jax.random.normal(ks[6], (oup, mip), jnp.float32),
        "bh":    jnp.zeros((oup, 1), jnp.float32),
        "ww":    0.2 * jax.random.normal(ks[7], (oup, mip), jnp.float32),
        "bw":    jnp.zeros((oup, 1), jnp.float32),
    }


def coord_att_reference(x, p):
    # Pure-JAX translation of the PyTorch forward (unfolded BN) for checking.
    x_h = jnp.mean(x, axis=3)                         # (N, C, H)
    x_w = jnp.mean(x, axis=2)                         # (N, C, W)
    y = jnp.concatenate([x_h, x_w], axis=2)           # (N, C, H+W)
    y = jnp.einsum("mc,ncs->nms", p["w1"], y) + p["b1"][None]
    y = (y - p["mean"][None]) / jnp.sqrt(p["var"][None] + BN_EPS) * p["gamma"][None] + p["beta"][None]
    y = y * jnp.clip(y + 3.0, 0.0, 6.0) / 6.0
    h = x.shape[2]
    yh, yw = y[:, :, :h], y[:, :, h:]
    a_h = jnp.einsum("om,nms->nos", p["wh"], yh) + p["bh"][None]   # (N, oup, H)
    a_w = jnp.einsum("om,nms->nos", p["ww"], yw) + p["bw"][None]   # (N, oup, W)
    return jax.nn.sigmoid(a_h[:, :, :, None] + a_w[:, :, None, :])


if __name__ == "__main__":
    key = jax.random.PRNGKey(0)
    kx, kp = jax.random.split(key)

    N, C, H, W = 2, 4, 16, 16
    inp, oup = C, 4
    x = jax.random.normal(kx, (N, C, H, W), jnp.float32)
    raw = make_params(kp, inp, oup, reduction=8)
    params = prepare_params(raw)          # one-time host-side BN fold

    out = jax.block_until_ready(coord_att(x, params))
    ref = coord_att_reference(x, raw)
    assert out.shape == (N, oup, H, W)
    assert jnp.allclose(out, ref, atol=1e-3, rtol=1e-3)

    # bf16 I/O path (memory-bound kernel -> ~half the HBM bytes); bf16 MXU
    # operands with f32 accumulation, all other arithmetic stays f32.
    out_bf16 = jax.block_until_ready(coord_att(x.astype(jnp.bfloat16), params))
    assert out_bf16.shape == (N, oup, H, W)
    assert out_bf16.dtype == jnp.bfloat16
    assert jnp.allclose(out_bf16.astype(jnp.float32), ref, atol=3e-2, rtol=3e-2)

    print("KERNEL_OK")
</pallas_src>

<mosaic_0001>
module attributes {stable_mosaic.version = 11 : i64} {
  func.func @kernel(%arg0: i32, %arg1: memref<8x256xf32, #tpu.memory_space<vmem>>, %arg2: memref<256x16xf32, #tpu.memory_space<vmem>>, %arg3: memref<256x16xf32, #tpu.memory_space<vmem>>, %arg4: memref<16x256xf32, #tpu.memory_space<vmem>>, %arg5: memref<16x256xf32, #tpu.memory_space<vmem>>, %arg6: memref<8x4xf32, #tpu.memory_space<vmem>>, %arg7: memref<8x1xf32, #tpu.memory_space<vmem>>, %arg8: memref<4x8xf32, #tpu.memory_space<vmem>>, %arg9: memref<4x1xf32, #tpu.memory_space<vmem>>, %arg10: memref<4x8xf32, #tpu.memory_space<vmem>>, %arg11: memref<4x1xf32, #tpu.memory_space<vmem>>, %arg12: memref<8x256xf32, #tpu.memory_space<vmem>>) attributes {dimension_semantics = [#tpu.dimension_semantics<parallel>], iteration_bounds = array<i64: 1>, scalar_prefetch = 0 : i64, scratch_operands = 0 : i64, tpu.core_type = #tpu.core_type<tc>, window_params = [{transform_indices = @transform_0, window_bounds = array<i64: 8, 256>}, {pipeline_mode = #tpu.pipeline_mode<synchronous>, transform_indices = @transform_1, window_bounds = array<i64: 256, 16>}, {pipeline_mode = #tpu.pipeline_mode<synchronous>, transform_indices = @transform_2, window_bounds = array<i64: 256, 16>}, {pipeline_mode = #tpu.pipeline_mode<synchronous>, transform_indices = @transform_3, window_bounds = array<i64: 16, 256>}, {pipeline_mode = #tpu.pipeline_mode<synchronous>, transform_indices = @transform_4, window_bounds = array<i64: 16, 256>}, {pipeline_mode = #tpu.pipeline_mode<synchronous>, transform_indices = @transform_5, window_bounds = array<i64: 8, 4>}, {pipeline_mode = #tpu.pipeline_mode<synchronous>, transform_indices = @transform_6, window_bounds = array<i64: 8, 1>}, {pipeline_mode = #tpu.pipeline_mode<synchronous>, transform_indices = @transform_7, window_bounds = array<i64: 4, 8>}, {pipeline_mode = #tpu.pipeline_mode<synchronous>, transform_indices = @transform_8, window_bounds = array<i64: 4, 1>}, {pipeline_mode = #tpu.pipeline_mode<synchronous>, transform_indices = @transform_9, window_bounds = array<i64: 4, 8>}, {pipeline_mode = #tpu.pipeline_mode<synchronous>, transform_indices = @transform_10, window_bounds = array<i64: 4, 1>}, {transform_indices = @transform_11, window_bounds = array<i64: 8, 256>}]} {
    %c0 = arith.constant 0 : index
    %c0_0 = arith.constant 0 : index
    %0 = vector.load %arg1[%c0, %c0_0] : memref<8x256xf32, #tpu.memory_space<vmem>>, vector<8x256xf32>
    %c0_1 = arith.constant 0 : index
    %c0_2 = arith.constant 0 : index
    %1 = vector.load %arg2[%c0_1, %c0_2] : memref<256x16xf32, #tpu.memory_space<vmem>>, vector<256x16xf32>
    %c0_3 = arith.constant 0 : index
    %c0_4 = arith.constant 0 : index
    %2 = vector.load %arg3[%c0_3, %c0_4] : memref<256x16xf32, #tpu.memory_space<vmem>>, vector<256x16xf32>
    %cst = arith.constant dense<0.000000e+00> : vector<8x16xf32>
    %3 = tpu.matmul %0, %1, %cst {dimension_numbers = #tpu.dot_dimension_numbers<[1], [0], [0], [1], [0, 0, 1, 1], [], []>} : vector<8x256xf32>, vector<256x16xf32>, vector<8x16xf32> -> vector<8x16xf32>
    %cst_5 = arith.constant 6.250000e-02 : f32
    %4 = vector.broadcast %cst_5 : f32 to vector<8x16xf32>
    %5 = arith.mulf %3, %4 : vector<8x16xf32>
    %cst_6 = arith.constant dense<0.000000e+00> : vector<8x16xf32>
    %6 = tpu.matmul %0, %2, %cst_6 {dimension_numbers = #tpu.dot_dimension_numbers<[1], [0], [0], [1], [0, 0, 1, 1], [], []>} : vector<8x256xf32>, vector<256x16xf32>, vector<8x16xf32> -> vector<8x16xf32>
    %cst_7 = arith.constant 6.250000e-02 : f32
    %7 = vector.broadcast %cst_7 : f32 to vector<8x16xf32>
    %8 = arith.mulf %6, %7 : vector<8x16xf32>
    %c0_8 = arith.constant 0 : index
    %c0_9 = arith.constant 0 : index
    %9 = vector.load %arg6[%c0_8, %c0_9] : memref<8x4xf32, #tpu.memory_space<vmem>>, vector<8x4xf32>
    %c0_10 = arith.constant 0 : index
    %c0_11 = arith.constant 0 : index
    %10 = vector.load %arg8[%c0_10, %c0_11] : memref<4x8xf32, #tpu.memory_space<vmem>>, vector<4x8xf32>
    %c0_12 = arith.constant 0 : index
    %c0_13 = arith.constant 0 : index
    %11 = vector.load %arg10[%c0_12, %c0_13] : memref<4x8xf32, #tpu.memory_space<vmem>>, vector<4x8xf32>
    %c0_14 = arith.constant 0 : index
    %c0_15 = arith.constant 0 : index
    %12 = vector.load %arg7[%c0_14, %c0_15] : memref<8x1xf32, #tpu.memory_space<vmem>>, vector<8x1xf32>
    %13 = vector.shape_cast %12 : vector<8x1xf32> to vector<8x1xf32>
    %14 = vector.broadcast %13 : vector<8x1xf32> to vector<8x16xf32>
    %c0_16 = arith.constant 0 : index
    %c0_17 = arith.constant 0 : index
    %15 = vector.load %arg7[%c0_16, %c0_17] : memref<8x1xf32, #tpu.memory_space<vmem>>, vector<8x1xf32>
    %16 = vector.shape_cast %15 : vector<8x1xf32> to vector<8x1xf32>
    %17 = vector.broadcast %16 : vector<8x1xf32> to vector<8x16xf32>
    %c0_18 = arith.constant 0 : index
    %c0_19 = arith.constant 0 : index
    %18 = vector.load %arg9[%c0_18, %c0_19] : memref<4x1xf32, #tpu.memory_space<vmem>>, vector<4x1xf32>
    %19 = vector.shape_cast %18 : vector<4x1xf32> to vector<4x1xf32>
    %20 = vector.broadcast %19 : vector<4x1xf32> to vector<4x16xf32>
    %c0_20 = arith.constant 0 : index
    %c0_21 = arith.constant 0 : index
    %21 = vector.load %arg11[%c0_20, %c0_21] : memref<4x1xf32, #tpu.memory_space<vmem>>, vector<4x1xf32>
    %22 = vector.shape_cast %21 : vector<4x1xf32> to vector<4x1xf32>
    %23 = vector.broadcast %22 : vector<4x1xf32> to vector<4x16xf32>
    %24 = vector.extract_strided_slice %5 {offsets = [0, 0], sizes = [4, 16], strides = [1, 1]} : vector<8x16xf32> to vector<4x16xf32>
    %25 = vector.extract_strided_slice %8 {offsets = [0, 0], sizes = [4, 16], strides = [1, 1]} : vector<8x16xf32> to vector<4x16xf32>
    %cst_22 = arith.constant dense<0.000000e+00> : vector<8x16xf32>
    %26 = tpu.matmul %9, %24, %cst_22 {dimension_numbers = #tpu.dot_dimension_numbers<[1], [0], [0], [1], [0, 0, 1, 1], [], []>} : vector<8x4xf32>, vector<4x16xf32>, vector<8x16xf32> -> vector<8x16xf32>
    %27 = arith.addf %26, %14 : vector<8x16xf32>
    %cst_23 = arith.constant dense<0.000000e+00> : vector<8x16xf32>
    %28 = tpu.matmul %9, %25, %cst_23 {dimension_numbers = #tpu.dot_dimension_numbers<[1], [0], [0], [1], [0, 0, 1, 1], [], []>} : vector<8x4xf32>, vector<4x16xf32>, vector<8x16xf32> -> vector<8x16xf32>
    %29 = arith.addf %28, %17 : vector<8x16xf32>
    %cst_24 = arith.constant 3.000000e+00 : f32
    %30 = vector.broadcast %cst_24 : f32 to vector<8x16xf32>
    %31 = arith.addf %27, %30 : vector<8x16xf32>
    %cst_25 = arith.constant 0.000000e+00 : f32
    %cst_26 = arith.constant 6.000000e+00 : f32
    %32 = vector.broadcast %cst_25 : f32 to vector<8x16xf32>
    %33 = arith.maximumf %32, %31 : vector<8x16xf32>
    %34 = vector.broadcast %cst_26 : f32 to vector<8x16xf32>
    %35 = arith.minimumf %34, %33 : vector<8x16xf32>
    %36 = arith.mulf %27, %35 : vector<8x16xf32>
    %cst_27 = arith.constant 0.166666672 : f32
    %37 = vector.broadcast %cst_27 : f32 to vector<8x16xf32>
    %38 = arith.mulf %36, %37 : vector<8x16xf32>
    %cst_28 = arith.constant 3.000000e+00 : f32
    %39 = vector.broadcast %cst_28 : f32 to vector<8x16xf32>
    %40 = arith.addf %29, %39 : vector<8x16xf32>
    %cst_29 = arith.constant 0.000000e+00 : f32
    %cst_30 = arith.constant 6.000000e+00 : f32
    %41 = vector.broadcast %cst_29 : f32 to vector<8x16xf32>
    %42 = arith.maximumf %41, %40 : vector<8x16xf32>
    %43 = vector.broadcast %cst_30 : f32 to vector<8x16xf32>
    %44 = arith.minimumf %43, %42 : vector<8x16xf32>
    %45 = arith.mulf %29, %44 : vector<8x16xf32>
    %cst_31 = arith.constant 0.166666672 : f32
    %46 = vector.broadcast %cst_31 : f32 to vector<8x16xf32>
    %47 = arith.mulf %45, %46 : vector<8x16xf32>
    %cst_32 = arith.constant dense<0.000000e+00> : vector<4x16xf32>
    %48 = tpu.matmul %10, %38, %cst_32 {dimension_numbers = #tpu.dot_dimension_numbers<[1], [0], [0], [1], [0, 0, 1, 1], [], []>} : vector<4x8xf32>, vector<8x16xf32>, vector<4x16xf32> -> vector<4x16xf32>
    %49 = arith.addf %48, %20 : vector<4x16xf32>
    %cst_33 = arith.constant dense<0.000000e+00> : vector<4x16xf32>
    %50 = tpu.matmul %11, %47, %cst_33 {dimension_numbers = #tpu.dot_dimension_numbers<[1], [0], [0], [1], [0, 0, 1, 1], [], []>} : vector<4x8xf32>, vector<8x16xf32>, vector<4x16xf32> -> vector<4x16xf32>
    %51 = arith.addf %50, %23 : vector<4x16xf32>
    %52 = vector.extract_strided_slice %5 {offsets = [4, 0], sizes = [4, 16], strides = [1, 1]} : vector<8x16xf32> to vector<4x16xf32>
    %53 = vector.extract_strided_slice %8 {offsets = [4, 0], sizes = [4, 16], strides = [1, 1]} : vector<8x16xf32> to vector<4x16xf32>
    %cst_34 = arith.constant dense<0.000000e+00> : vector<8x16xf32>
    %54 = tpu.matmul %9, %52, %cst_34 {dimension_numbers = #tpu.dot_dimension_numbers<[1], [0], [0], [1], [0, 0, 1, 1], [], []>} : vector<8x4xf32>, vector<4x16xf32>, vector<8x16xf32> -> vector<8x16xf32>
    %55 = arith.addf %54, %14 : vector<8x16xf32>
    %cst_35 = arith.constant dense<0.000000e+00> : vector<8x16xf32>
    %56 = tpu.matmul %9, %53, %cst_35 {dimension_numbers = #tpu.dot_dimension_numbers<[1], [0], [0], [1], [0, 0, 1, 1], [], []>} : vector<8x4xf32>, vector<4x16xf32>, vector<8x16xf32> -> vector<8x16xf32>
    %57 = arith.addf %56, %17 : vector<8x16xf32>
    %cst_36 = arith.constant 3.000000e+00 : f32
    %58 = vector.broadcast %cst_36 : f32 to vector<8x16xf32>
    %59 = arith.addf %55, %58 : vector<8x16xf32>
    %cst_37 = arith.constant 0.000000e+00 : f32
    %cst_38 = arith.constant 6.000000e+00 : f32
    %60 = vector.broadcast %cst_37 : f32 to vector<8x16xf32>
    %61 = arith.maximumf %60, %59 : vector<8x16xf32>
    %62 = vector.broadcast %cst_38 : f32 to vector<8x16xf32>
    %63 = arith.minimumf %62, %61 : vector<8x16xf32>
    %64 = arith.mulf %55, %63 : vector<8x16xf32>
    %cst_39 = arith.constant 0.166666672 : f32
    %65 = vector.broadcast %cst_39 : f32 to vector<8x16xf32>
    %66 = arith.mulf %64, %65 : vector<8x16xf32>
    %cst_40 = arith.constant 3.000000e+00 : f32
    %67 = vector.broadcast %cst_40 : f32 to vector<8x16xf32>
    %68 = arith.addf %57, %67 : vector<8x16xf32>
    %cst_41 = arith.constant 0.000000e+00 : f32
    %cst_42 = arith.constant 6.000000e+00 : f32
    %69 = vector.broadcast %cst_41 : f32 to vector<8x16xf32>
    %70 = arith.maximumf %69, %68 : vector<8x16xf32>
    %71 = vector.broadcast %cst_42 : f32 to vector<8x16xf32>
    %72 = arith.minimumf %71, %70 : vector<8x16xf32>
    %73 = arith.mulf %57, %72 : vector<8x16xf32>
    %cst_43 = arith.constant 0.166666672 : f32
    %74 = vector.broadcast %cst_43 : f32 to vector<8x16xf32>
    %75 = arith.mulf %73, %74 : vector<8x16xf32>
    %cst_44 = arith.constant dense<0.000000e+00> : vector<4x16xf32>
    %76 = tpu.matmul %10, %66, %cst_44 {dimension_numbers = #tpu.dot_dimension_numbers<[1], [0], [0], [1], [0, 0, 1, 1], [], []>} : vector<4x8xf32>, vector<8x16xf32>, vector<4x16xf32> -> vector<4x16xf32>
    %77 = arith.addf %76, %20 : vector<4x16xf32>
    %cst_45 = arith.constant dense<0.000000e+00> : vector<4x16xf32>
    %78 = tpu.matmul %11, %75, %cst_45 {dimension_numbers = #tpu.dot_dimension_numbers<[1], [0], [0], [1], [0, 0, 1, 1], [], []>} : vector<4x8xf32>, vector<8x16xf32>, vector<4x16xf32> -> vector<4x16xf32>
    %79 = arith.addf %78, %23 : vector<4x16xf32>
    %80 = tpu.concatenate %49, %77 in 0 : vector<4x16xf32>, vector<4x16xf32> -> vector<8x16xf32>
    %81 = tpu.concatenate %51, %79 in 0 : vector<4x16xf32>, vector<4x16xf32> -> vector<8x16xf32>
    %c0_46 = arith.constant 0 : index
    %c0_47 = arith.constant 0 : index
    %82 = vector.load %arg4[%c0_46, %c0_47] : memref<16x256xf32, #tpu.memory_space<vmem>>, vector<16x256xf32>
    %c0_48 = arith.constant 0 : index
    %c0_49 = arith.constant 0 : index
    %83 = vector.load %arg5[%c0_48, %c0_49] : memref<16x256xf32, #tpu.memory_space<vmem>>, vector<16x256xf32>
    %cst_50 = arith.constant dense<0.000000e+00> : vector<8x256xf32>
    %84 = tpu.matmul %80, %82, %cst_50 {dimension_numbers = #tpu.dot_dimension_numbers<[1], [0], [0], [1], [0, 0, 1, 1], [], []>} : vector<8x16xf32>, vector<16x256xf32>, vector<8x256xf32> -> vector<8x256xf32>
    %cst_51 = arith.constant dense<0.000000e+00> : vector<8x256xf32>
    %85 = tpu.matmul %81, %83, %cst_51 {dimension_numbers = #tpu.dot_dimension_numbers<[1], [0], [0], [1], [0, 0, 1, 1], [], []>} : vector<8x16xf32>, vector<16x256xf32>, vector<8x256xf32> -> vector<8x256xf32>
    %86 = arith.addf %84, %85 : vector<8x256xf32>
    %87 = arith.negf %86 : vector<8x256xf32>
    %88 = math.exp %87 : vector<8x256xf32>
    %cst_52 = arith.constant 1.000000e+00 : f32
    %89 = vector.broadcast %cst_52 : f32 to vector<8x256xf32>
    %90 = arith.addf %89, %88 : vector<8x256xf32>
    %91 = arith.divf %89, %90 : vector<8x256xf32>
    %c0_53 = arith.constant 0 : index
    %c0_54 = arith.constant 0 : index
    %92 = vector.load %arg12[%c0_53, %c0_54] : memref<8x256xf32, #tpu.memory_space<vmem>>, vector<8x256xf32>
    tpu.vector_store %arg12[%c0_53, %c0_54], %91 {strides = array<i32>} : memref<8x256xf32, #tpu.memory_space<vmem>>, vector<8x256xf32>,
    return
  }
  func.func @transform_0(%arg0: i32) -> (i32, i32) {
    %c0_i32 = arith.constant 0 : i32
    %c0_i32_0 = arith.constant 0 : i32
    return %arg0, %c0_i32 : i32, i32
  }
  func.func @transform_1(%arg0: i32) -> (i32, i32) {
    %c0_i32 = arith.constant 0 : i32
    %c0_i32_0 = arith.constant 0 : i32
    %c0_i32_1 = arith.constant 0 : i32
    return %c0_i32, %c0_i32_0 : i32, i32
  }
  func.func @transform_2(%arg0: i32) -> (i32, i32) {
    %c0_i32 = arith.constant 0 : i32
    %c0_i32_0 = arith.constant 0 : i32
    %c0_i32_1 = arith.constant 0 : i32
    return %c0_i32, %c0_i32_0 : i32, i32
  }
  func.func @transform_3(%arg0: i32) -> (i32, i32) {
    %c0_i32 = arith.constant 0 : i32
    %c0_i32_0 = arith.constant 0 : i32
    %c0_i32_1 = arith.constant 0 : i32
    return %c0_i32, %c0_i32_0 : i32, i32
  }
  func.func @transform_4(%arg0: i32) -> (i32, i32) {
    %c0_i32 = arith.constant 0 : i32
    %c0_i32_0 = arith.constant 0 : i32
    %c0_i32_1 = arith.constant 0 : i32
    return %c0_i32, %c0_i32_0 : i32, i32
  }
  func.func @transform_5(%arg0: i32) -> (i32, i32) {
    %c0_i32 = arith.constant 0 : i32
    %c0_i32_0 = arith.constant 0 : i32
    %c0_i32_1 = arith.constant 0 : i32
    return %c0_i32, %c0_i32_0 : i32, i32
  }
  func.func @transform_6(%arg0: i32) -> (i32, i32) {
    %c0_i32 = arith.constant 0 : i32
    %c0_i32_0 = arith.constant 0 : i32
    %c0_i32_1 = arith.constant 0 : i32
    return %c0_i32, %c0_i32_0 : i32, i32
  }
  func.func @transform_7(%arg0: i32) -> (i32, i32) {
    %c0_i32 = arith.constant 0 : i32
    %c0_i32_0 = arith.constant 0 : i32
    %c0_i32_1 = arith.constant 0 : i32
    return %c0_i32, %c0_i32_0 : i32, i32
  }
  func.func @transform_8(%arg0: i32) -> (i32, i32) {
    %c0_i32 = arith.constant 0 : i32
    %c0_i32_0 = arith.constant 0 : i32
    %c0_i32_1 = arith.constant 0 : i32
    return %c0_i32, %c0_i32_0 : i32, i32
  }
  func.func @transform_9(%arg0: i32) -> (i32, i32) {
    %c0_i32 = arith.constant 0 : i32
    %c0_i32_0 = arith.constant 0 : i32
    %c0_i32_1 = arith.constant 0 : i32
    return %c0_i32, %c0_i32_0 : i32, i32
  }
  func.func @transform_10(%arg0: i32) -> (i32, i32) {
    %c0_i32 = arith.constant 0 : i32
    %c0_i32_0 = arith.constant 0 : i32
    %c0_i32_1 = arith.constant 0 : i32
    return %c0_i32, %c0_i32_0 : i32, i32
  }
  func.func @transform_11(%arg0: i32) -> (i32, i32) {
    %c0_i32 = arith.constant 0 : i32
    %c0_i32_0 = arith.constant 0 : i32
    return %arg0, %c0_i32 : i32, i32
  }
}

</mosaic_0001>

<llo_original>
// kernel: tpu_custom_call.1
$region0: #{tpu_custom_call.1}
  #allocation0 [shape = 'u32[]', space=smem, size = 0x4, offset = 0x4, fixed_abs, tag = 'smem constant byte address 0x4 - core index']
  #allocation1 [shape = 'u32[144,128]{1,0:T(1,128)}', space=vmem, size = 0x12000, scoped, tag = 'internal scratch']
  %s0 = inlined_call_operand.vmem [shape: f32[8,256], index: 0, kind: input, shape index: {}]
  %s1 = inlined_call_operand.vmem [shape: f32[256,16], index: 1, kind: input, shape index: {}]
  %s2 = inlined_call_operand.vmem [shape: f32[256,16], index: 2, kind: input, shape index: {}]
  %s3 = inlined_call_operand.vmem [shape: f32[16,256], index: 3, kind: input, shape index: {}]
  %s4 = inlined_call_operand.vmem [shape: f32[16,256], index: 4, kind: input, shape index: {}]
  %s5 = inlined_call_operand.vmem [shape: f32[8,4], index: 5, kind: input, shape index: {}]
  %s6 = inlined_call_operand.vmem [shape: f32[8,1], index: 6, kind: input, shape index: {}]
  %s7 = inlined_call_operand.vmem [shape: f32[4,8], index: 7, kind: input, shape index: {}]
  %s8 = inlined_call_operand.vmem [shape: f32[4,1], index: 8, kind: input, shape index: {}]
  %s9 = inlined_call_operand.vmem [shape: f32[4,8], index: 9, kind: input, shape index: {}]
  %s10 = inlined_call_operand.vmem [shape: f32[4,1], index: 10, kind: input, shape index: {}]
  %s11 = inlined_call_operand.hbm [shape: f32[8,256], index: 11, kind: output, shape index: {}]
  %s12 = sld [smem:[#allocation0]]
  $region54: #{tpu_custom_call.1} parent=0
    _
  %s14 = ssub.s32 1, %s12
  %s15 = scalar_select 0, %s14, %s12
  $region1: #{tpu_custom_call.1} parent=0
    #allocation2 [shape = 'u8[8192]{0}', space=vmem, size = 0x2000, scoped, tag = 'output window, operand 0, single buffered']
    #allocation3 [shape = 's32[1]{0}', space=sflag, size = 0x4, scoped, tag = 'scoped memory for tpu_custom_call.1']
    %16 = vsyncpa [#allocation3], 0
    // Predicated region
    $region2: #{tpu_custom_call.1} parent=1 // pred_check
      _
    $region3: #{tpu_custom_call.1} parent=1 // pred_check_branch
      %18 = sbr.rel (0) target = $region5
    $region4: #{tpu_custom_call.1} parent=1 // pred_region
      _
    $region5: #{tpu_custom_call.1} parent=1 // pred_fallthru
      _
    // Predicated region
    $region6: #{tpu_custom_call.1} parent=1 // pred_check
      _
    $region7: #{tpu_custom_call.1} parent=1 // pred_check_branch
      %20 = sbr.rel (0) target = $region9
    $region8: #{tpu_custom_call.1} parent=1 // pred_region
      _
    $region9: #{tpu_custom_call.1} parent=1 // pred_fallthru
      _
    // Predicated region
    $region10: #{tpu_custom_call.1} parent=1 // pred_check
      _
    $region11: #{tpu_custom_call.1} parent=1 // pred_check_branch
      %22 = sbr.rel (0) target = $region13
    $region12: #{tpu_custom_call.1} parent=1 // pred_region
      _
    $region13: #{tpu_custom_call.1} parent=1 // pred_fallthru
      _
    // Predicated region
    $region14: #{tpu_custom_call.1} parent=1 // pred_check
      _
    $region15: #{tpu_custom_call.1} parent=1 // pred_check_branch
      %24 = sbr.rel (0) target = $region17
    $region16: #{tpu_custom_call.1} parent=1 // pred_region
      _
    $region17: #{tpu_custom_call.1} parent=1 // pred_fallthru
      _
    // Predicated region
    $region18: #{tpu_custom_call.1} parent=1 // pred_check
      _
    $region19: #{tpu_custom_call.1} parent=1 // pred_check_branch
      %26 = sbr.rel (0) target = $region21
    $region20: #{tpu_custom_call.1} parent=1 // pred_region
      _
    $region21: #{tpu_custom_call.1} parent=1 // pred_fallthru
      _
    // Predicated region
    $region22: #{tpu_custom_call.1} parent=1 // pred_check
      _
    $region23: #{tpu_custom_call.1} parent=1 // pred_check_branch
      %28 = sbr.rel (0) target = $region25
    $region24: #{tpu_custom_call.1} parent=1 // pred_region
      _
    $region25: #{tpu_custom_call.1} parent=1 // pred_fallthru
      _
    // Predicated region
    $region26: #{tpu_custom_call.1} parent=1 // pred_check
      _
    $region27: #{tpu_custom_call.1} parent=1 // pred_check_branch
      %30 = sbr.rel (0) target = $region29
    $region28: #{tpu_custom_call.1} parent=1 // pred_region
      _
    $region29: #{tpu_custom_call.1} parent=1 // pred_fallthru
      _
    // Predicated region
    $region30: #{tpu_custom_call.1} parent=1 // pred_check
      _
    $region31: #{tpu_custom_call.1} parent=1 // pred_check_branch
      %32 = sbr.rel (0) target = $region33
    $region32: #{tpu_custom_call.1} parent=1 // pred_region
      _
    $region33: #{tpu_custom_call.1} parent=1 // pred_fallthru
      _
    // Predicated region
    $region34: #{tpu_custom_call.1} parent=1 // pred_check
      _
    $region35: #{tpu_custom_call.1} parent=1 // pred_check_branch
      %34 = sbr.rel (0) target = $region37
    $region36: #{tpu_custom_call.1} parent=1 // pred_region
      _
    $region37: #{tpu_custom_call.1} parent=1 // pred_fallthru
      _
    // Predicated region
    $region38: #{tpu_custom_call.1} parent=1 // pred_check
      _
    $region39: #{tpu_custom_call.1} parent=1 // pred_check_branch
      %36 = sbr.rel (0) target = $region41
    $region40: #{tpu_custom_call.1} parent=1 // pred_region
      _
    $region41: #{tpu_custom_call.1} parent=1 // pred_fallthru
      _
    // Predicated region
    $region42: #{tpu_custom_call.1} parent=1 // pred_check
      _
    $region43: #{tpu_custom_call.1} parent=1 // pred_check_branch
      %38 = sbr.rel (0) target = $region45
    $region44: #{tpu_custom_call.1} parent=1 // pred_region
      _
    $region45: #{tpu_custom_call.1} parent=1 // pred_fallthru
      _
    %v39 = vld [vmem:[%s0] sm:$0xff]
    %v40 = vld [vmem:[%s0 + $0x8] sm:$0xff]
    %v41 = vld [vmem:[%s1] sm:$0xff]
    %v42 = vld [vmem:[%s1 + $0x8] sm:$0xff]
    %v43 = vld [vmem:[%s1 + $0x10] sm:$0xff]
    %v44 = vld [vmem:[%s1 + $0x18] sm:$0xff]
    %v45 = vld [vmem:[%s1 + $0x20] sm:$0xff]
    %v46 = vld [vmem:[%s1 + $0x28] sm:$0xff]
    %v47 = vld [vmem:[%s1 + $0x30] sm:$0xff]
    %v48 = vld [vmem:[%s1 + $0x38] sm:$0xff]
    %v49 = vld [vmem:[%s1 + $0x40] sm:$0xff]
    %v50 = vld [vmem:[%s1 + $0x48] sm:$0xff]
    %v51 = vld [vmem:[%s1 + $0x50] sm:$0xff]
    %v52 = vld [vmem:[%s1 + $0x58] sm:$0xff]
    %v53 = vld [vmem:[%s1 + $0x60] sm:$0xff]
    %v54 = vld [vmem:[%s1 + $0x68] sm:$0xff]
    %v55 = vld [vmem:[%s1 + $0x70] sm:$0xff]
    %v56 = vld [vmem:[%s1 + $0x78] sm:$0xff]
    %v57 = vld [vmem:[%s1 + $0x80] sm:$0xff]
    %v58 = vld [vmem:[%s1 + $0x88] sm:$0xff]
    %v59 = vld [vmem:[%s1 + $0x90] sm:$0xff]
    %v60 = vld [vmem:[%s1 + $0x98] sm:$0xff]
    %v61 = vld [vmem:[%s1 + $0xa0] sm:$0xff]
    %v62 = vld [vmem:[%s1 + $0xa8] sm:$0xff]
    %v63 = vld [vmem:[%s1 + $0xb0] sm:$0xff]
    %v64 = vld [vmem:[%s1 + $0xb8] sm:$0xff]
    %v65 = vld [vmem:[%s1 + $0xc0] sm:$0xff]
    %v66 = vld [vmem:[%s1 + $0xc8] sm:$0xff]
    %v67 = vld [vmem:[%s1 + $0xd0] sm:$0xff]
    %v68 = vld [vmem:[%s1 + $0xd8] sm:$0xff]
    %v69 = vld [vmem:[%s1 + $0xe0] sm:$0xff]
    %v70 = vld [vmem:[%s1 + $0xe8] sm:$0xff]
    %v71 = vld [vmem:[%s1 + $0xf0] sm:$0xff]
    %v72 = vld [vmem:[%s1 + $0xf8] sm:$0xff]
    %v73 = vld [vmem:[%s2] sm:$0xff]
    %v74 = vld [vmem:[%s2 + $0x8] sm:$0xff]
    %v75 = vld [vmem:[%s2 + $0x10] sm:$0xff]
    %v76 = vld [vmem:[%s2 + $0x18] sm:$0xff]
    %v77 = vld [vmem:[%s2 + $0x20] sm:$0xff]
    %v78 = vld [vmem:[%s2 + $0x28] sm:$0xff]
    %v79 = vld [vmem:[%s2 + $0x30] sm:$0xff]
    %v80 = vld [vmem:[%s2 + $0x38] sm:$0xff]
    %v81 = vld [vmem:[%s2 + $0x40] sm:$0xff]
    %v82 = vld [vmem:[%s2 + $0x48] sm:$0xff]
    %v83 = vld [vmem:[%s2 + $0x50] sm:$0xff]
    %v84 = vld [vmem:[%s2 + $0x58] sm:$0xff]
    %v85 = vld [vmem:[%s2 + $0x60] sm:$0xff]
    %v86 = vld [vmem:[%s2 + $0x68] sm:$0xff]
    %v87 = vld [vmem:[%s2 + $0x70] sm:$0xff]
    %v88 = vld [vmem:[%s2 + $0x78] sm:$0xff]
    %v89 = vld [vmem:[%s2 + $0x80] sm:$0xff]
    %v90 = vld [vmem:[%s2 + $0x88] sm:$0xff]
    %v91 = vld [vmem:[%s2 + $0x90] sm:$0xff]
    %v92 = vld [vmem:[%s2 + $0x98] sm:$0xff]
    %v93 = vld [vmem:[%s2 + $0xa0] sm:$0xff]
    %v94 = vld [vmem:[%s2 + $0xa8] sm:$0xff]
    %v95 = vld [vmem:[%s2 + $0xb0] sm:$0xff]
    %v96 = vld [vmem:[%s2 + $0xb8] sm:$0xff]
    %v97 = vld [vmem:[%s2 + $0xc0] sm:$0xff]
    %v98 = vld [vmem:[%s2 + $0xc8] sm:$0xff]
    %v99 = vld [vmem:[%s2 + $0xd0] sm:$0xff]
    %v100 = vld [vmem:[%s2 + $0xd8] sm:$0xff]
    %v101 = vld [vmem:[%s2 + $0xe0] sm:$0xff]
    %v102 = vld [vmem:[%s2 + $0xe8] sm:$0xff]
    %v103 = vld [vmem:[%s2 + $0xf0] sm:$0xff]
    %v104 = vld [vmem:[%s2 + $0xf8] sm:$0xff]
    %105 = vmatprep.subr.mxu0 0.0
    %106 = vmatpush1.msra.mxu0 %v56
    %107 = vmatprep.subr.mxu0 0.0
    %108 = vmatpush1.msra.mxu0 %v55
    %109 = vmatprep.subr.mxu0 0.0
    %110 = vmatpush1.msra.mxu0 %v54
    %111 = vmatprep.subr.mxu0 0.0
    %112 = vmatpush1.msra.mxu0 %v53
    %113 = vmatprep.subr.mxu0 0.0
    %114 = vmatpush1.msra.mxu0 %v52
    %115 = vmatprep.subr.mxu0 0.0
    %116 = vmatpush1.msra.mxu0 %v51
    %117 = vmatprep.subr.mxu0 0.0
    %118 = vmatpush1.msra.mxu0 %v50
    %119 = vmatprep.subr.mxu0 0.0
    %120 = vmatpush1.msra.mxu0 %v49
    %121 = vmatprep.subr.mxu0 0.0
    %122 = vmatpush1.msra.mxu0 %v48
    %123 = vmatprep.subr.mxu0 0.0
    %124 = vmatpush1.msra.mxu0 %v47
    %125 = vmatprep.subr.mxu0 0.0
    %126 = vmatpush1.msra.mxu0 %v46
    %127 = vmatprep.subr.mxu0 0.0
    %128 = vmatpush1.msra.mxu0 %v45
    %129 = vmatprep.subr.mxu0 0.0
    %130 = vmatpush1.msra.mxu0 %v44
    %131 = vmatprep.subr.mxu0 0.0
    %132 = vmatpush1.msra.mxu0 %v43
    %133 = vmatprep.subr.mxu0 0.0
    %134 = vmatpush1.msra.mxu0 %v42
    %135 = vmatprep.subr.mxu0 0.0
    %136 = vmatpush1.msra.mxu0 %v41
    %137 = vmatprep.subr.mxu0 0.0
    %138 = vmatpush2.msra.mxu0 %v72
    %139 = vmatprep.subr.mxu0 0.0
    %140 = vmatpush2.msra.mxu0 %v71
    %141 = vmatprep.subr.mxu0 0.0
    %142 = vmatpush2.msra.mxu0 %v70
    %143 = vmatprep.subr.mxu0 0.0
    %144 = vmatpush2.msra.mxu0 %v69
    %145 = vmatprep.subr.mxu0 0.0
    %146 = vmatpush2.msra.mxu0 %v68
    %147 = vmatprep.subr.mxu0 0.0
    %148 = vmatpush2.msra.mxu0 %v67
    %149 = vmatprep.subr.mxu0 0.0
    %150 = vmatpush2.msra.mxu0 %v66
    %151 = vmatprep.subr.mxu0 0.0
    %152 = vmatpush2.msra.mxu0 %v65
    %153 = vmatprep.subr.mxu0 0.0
    %154 = vmatpush2.msra.mxu0 %v64
    %155 = vmatprep.subr.mxu0 0.0
    %156 = vmatpush2.msra.mxu0 %v63
    %157 = vmatprep.subr.mxu0 0.0
    %158 = vmatpush2.msra.mxu0 %v62
    %159 = vmatprep.subr.mxu0 0.0
    %160 = vmatpush2.msra.mxu0 %v61
    %161 = vmatprep.subr.mxu0 0.0
    %162 = vmatpush2.msra.mxu0 %v60
    %163 = vmatprep.subr.mxu0 0.0
    %164 = vmatpush2.msra.mxu0 %v59
    %165 = vmatprep.subr.mxu0 0.0
    %166 = vmatpush2.msra.mxu0 %v58
    %167 = vmatprep.subr.mxu0 0.0
    %168 = vmatpush2.msra.mxu0 %v57
    %169 = vmatprep.mubr.f32.mxu0 %v40
    %170 = vmatmul.mubr.f32.gmra.mxu0 %v39
    %v171 = vpop.f32.mrf.mxu0
    %v172 = vadd.f32 0.0, %v171
    %v173 = vpop.f32.mrf.mxu0
    %174 = vdwg.mxu0
    %v175 = vmul.f32 %v172, 0.0625
    %176 = vmatprep.subr.mxu0 0.0
    %177 = vmatpush1.msra.mxu0 %v88
    %178 = vmatprep.subr.mxu0 0.0
    %179 = vmatpush1.msra.mxu0 %v87
    %180 = vmatprep.subr.mxu0 0.0
    %181 = vmatpush1.msra.mxu0 %v86
    %182 = vmatprep.subr.mxu0 0.0
    %183 = vmatpush1.msra.mxu0 %v85
    %184 = vmatprep.subr.mxu0 0.0
    %185 = vmatpush1.msra.mxu0 %v84
    %186 = vmatprep.subr.mxu0 0.0
    %187 = vmatpush1.msra.mxu0 %v83
    %188 = vmatprep.subr.mxu0 0.0
    %189 = vmatpush1.msra.mxu0 %v82
    %190 = vmatprep.subr.mxu0 0.0
    %191 = vmatpush1.msra.mxu0 %v81
    %192 = vmatprep.subr.mxu0 0.0
    %193 = vmatpush1.msra.mxu0 %v80
    %194 = vmatprep.subr.mxu0 0.0
    %195 = vmatpush1.msra.mxu0 %v79
    %196 = vmatprep.subr.mxu0 0.0
    %197 = vmatpush1.msra.mxu0 %v78
    %198 = vmatprep.subr.mxu0 0.0
    %199 = vmatpush1.msra.mxu0 %v77
    %200 = vmatprep.subr.mxu0 0.0
    %201 = vmatpush1.msra.mxu0 %v76
    %202 = vmatprep.subr.mxu0 0.0
    %203 = vmatpush1.msra.mxu0 %v75
    %204 = vmatprep.subr.mxu0 0.0
    %205 = vmatpush1.msra.mxu0 %v74
    %206 = vmatprep.subr.mxu0 0.0
    %207 = vmatpush1.msra.mxu0 %v73
    %208 = vmatprep.subr.mxu0 0.0
    %209 = vmatpush2.msra.mxu0 %v104
    %210 = vmatprep.subr.mxu0 0.0
    %211 = vmatpush2.msra.mxu0 %v103
    %212 = vmatprep.subr.mxu0 0.0
    %213 = vmatpush2.msra.mxu0 %v102
    %214 = vmatprep.subr.mxu0 0.0
    %215 = vmatpush2.msra.mxu0 %v101
    %216 = vmatprep.subr.mxu0 0.0
    %217 = vmatpush2.msra.mxu0 %v100
    %218 = vmatprep.subr.mxu0 0.0
    %219 = vmatpush2.msra.mxu0 %v99
    %220 = vmatprep.subr.mxu0 0.0
    %221 = vmatpush2.msra.mxu0 %v98
    %222 = vmatprep.subr.mxu0 0.0
    %223 = vmatpush2.msra.mxu0 %v97
    %224 = vmatprep.subr.mxu0 0.0
    %225 = vmatpush2.msra.mxu0 %v96
    %226 = vmatprep.subr.mxu0 0.0
    %227 = vmatpush2.msra.mxu0 %v95
    %228 = vmatprep.subr.mxu0 0.0
    %229 = vmatpush2.msra.mxu0 %v94
    %230 = vmatprep.subr.mxu0 0.0
    %231 = vmatpush2.msra.mxu0 %v93
    %232 = vmatprep.subr.mxu0 0.0
    %233 = vmatpush2.msra.mxu0 %v92
    %234 = vmatprep.subr.mxu0 0.0
    %235 = vmatpush2.msra.mxu0 %v91
    %236 = vmatprep.subr.mxu0 0.0
    %237 = vmatpush2.msra.mxu0 %v90
    %238 = vmatprep.subr.mxu0 0.0
    %239 = vmatpush2.msra.mxu0 %v89
    %240 = vmatprep.mubr.f32.mxu0 %v40
    %241 = vmatmul.mubr.f32.gmra.mxu0 %v39
    %v242 = vpop.f32.mrf.mxu0
    %v243 = vadd.f32 0.0, %v242
    %v244 = vpop.f32.mrf.mxu0
    %245 = vdwg.mxu0
    %v246 = vmul.f32 %v243, 0.0625
    %v247 = vld [vmem:[%s5] sm:$0xff]
    %v248 = vld [vmem:[%s7] sm:$0xf]
    %v249 = vld [vmem:[%s9] sm:$0xf]
    %v250 = vld [vmem:[%s6] sm:$0xff]
    %252 = vset.pattern.permute.xlu0 0
    %253 = vperm.xlu0 %252, %v250
    %v254 = vpop.permute.xlu0 %253
    %v256 = vld [vmem:[%s8] sm:$0xf]
    %258 = vset.pattern.permute.xlu0 0
    %259 = vperm.xlu0 %258, %v256
    %v260 = vpop.permute.xlu0 %259
    %v262 = vld [vmem:[%s10] sm:$0xf]
    %264 = vset.pattern.permute.xlu0 0
    %265 = vperm.xlu0 %264, %v262
    %v266 = vpop.permute.xlu0 %265
    %vm268 = vcmask 31744
    %v270 = vsel %vm268, %v247, 0
    %vm272 = vcmask 1043456
    %v274 = vsel %vm272, %v175, 0
    %276 = vmatprep.subr.mxu0 0.0
    %277 = vmatpush1.msra.mxu0 0.0
    %278 = vmatprep.subr.mxu0 0.0
    %279 = vmatpush1.msra.mxu0 0.0
    %280 = vmatprep.subr.mxu0 0.0
    %281 = vmatpush1.msra.mxu0 0.0
    %282 = vmatprep.subr.mxu0 0.0
    %283 = vmatpush1.msra.mxu0 0.0
    %284 = vmatprep.subr.mxu0 0.0
    %285 = vmatpush1.msra.mxu0 0.0
    %286 = vmatprep.subr.mxu0 0.0
    %287 = vmatpush1.msra.mxu0 0.0
    %288 = vmatprep.subr.mxu0 0.0
    %289 = vmatpush1.msra.mxu0 0.0
    %290 = vmatprep.subr.mxu0 0.0
    %291 = vmatpush1.msra.mxu0 0.0
    %292 = vmatprep.subr.mxu0 0.0
    %293 = vmatpush1.msra.mxu0 0.0
    %294 = vmatprep.subr.mxu0 0.0
    %295 = vmatpush1.msra.mxu0 0.0
    %296 = vmatprep.subr.mxu0 0.0
    %297 = vmatpush1.msra.mxu0 0.0
    %298 = vmatprep.subr.mxu0 0.0
    %299 = vmatpush1.msra.mxu0 0.0
    %300 = vmatprep.subr.mxu0 0.0
    %301 = vmatpush1.msra.mxu0 0.0
    %302 = vmatprep.subr.mxu0 0.0
    %303 = vmatpush1.msra.mxu0 0.0
    %304 = vmatprep.subr.mxu0 0.0
    %305 = vmatpush1.msra.mxu0 0.0
    %306 = vmatprep.subr.mxu0 0.0
    %307 = vmatpush1.msra.mxu0 %v274
    %308 = vmatprep.subr.mxu0 0.0
    %309 = vmatpush2.msra.mxu0 0.0
    %310 = vmatprep.subr.mxu0 0.0
    %311 = vmatpush2.msra.mxu0 0.0
    %312 = vmatprep.subr.mxu0 0.0
    %313 = vmatpush2.msra.mxu0 0.0
    %314 = vmatprep.subr.mxu0 0.0
    %315 = vmatpush2.msra.mxu0 0.0
    %316 = vmatprep.subr.mxu0 0.0
    %317 = vmatpush2.msra.mxu0 0.0
    %318 = vmatprep.subr.mxu0 0.0
    %319 = vmatpush2.msra.mxu0 0.0
    %320 = vmatprep.subr.mxu0 0.0
    %321 = vmatpush2.msra.mxu0 0.0
    %322 = vmatprep.subr.mxu0 0.0
    %323 = vmatpush2.msra.mxu0 0.0
    %324 = vmatprep.subr.mxu0 0.0
    %325 = vmatpush2.msra.mxu0 0.0
    %326 = vmatprep.subr.mxu0 0.0
    %327 = vmatpush2.msra.mxu0 0.0
    %328 = vmatprep.subr.mxu0 0.0
    %329 = vmatpush2.msra.mxu0 0.0
    %330 = vmatprep.subr.mxu0 0.0
    %331 = vmatpush2.msra.mxu0 0.0
    %332 = vmatprep.subr.mxu0 0.0
    %333 = vmatpush2.msra.mxu0 0.0
    %334 = vmatprep.subr.mxu0 0.0
    %335 = vmatpush2.msra.mxu0 0.0
    %336 = vmatprep.subr.mxu0 0.0
    %337 = vmatpush2.msra.mxu0 0.0
    %338 = vmatprep.subr.mxu0 0.0
    %339 = vmatpush2.msra.mxu0 0.0
    %340 = vmatprep.mubr.f32.mxu0 0.0
    %341 = vmatmul.mubr.f32.gmra.mxu0 %v270
    %v342 = vpop.f32.mrf.mxu0
    %v343 = vadd.f32 %v254, %v342
    %v344 = vpop.f32.mrf.mxu0
    %345 = vdwg.mxu0
    %v347 = vsel %vm272, %v246, 0
    %349 = vmatprep.subr.mxu0 0.0
    %350 = vmatpush1.msra.mxu0 0.0
    %351 = vmatprep.subr.mxu0 0.0
    %352 = vmatpush1.msra.mxu0 0.0
    %353 = vmatprep.subr.mxu0 0.0
    %354 = vmatpush1.msra.mxu0 0.0
    %355 = vmatprep.subr.mxu0 0.0
    %356 = vmatpush1.msra.mxu0 0.0
    %357 = vmatprep.subr.mxu0 0.0
    %358 = vmatpush1.msra.mxu0 0.0
    %359 = vmatprep.subr.mxu0 0.0
    %360 = vmatpush1.msra.mxu0 0.0
    %361 = vmatprep.subr.mxu0 0.0
    %362 = vmatpush1.msra.mxu0 0.0
    %363 = vmatprep.subr.mxu0 0.0
    %364 = vmatpush1.msra.mxu0 0.0
    %365 = vmatprep.subr.mxu0 0.0
    %366 = vmatpush1.msra.mxu0 0.0
    %367 = vmatprep.subr.mxu0 0.0
    %368 = vmatpush1.msra.mxu0 0.0
    %369 = vmatprep.subr.mxu0 0.0
    %370 = vmatpush1.msra.mxu0 0.0
    %371 = vmatprep.subr.mxu0 0.0
    %372 = vmatpush1.msra.mxu0 0.0
    %373 = vmatprep.subr.mxu0 0.0
    %374 = vmatpush1.msra.mxu0 0.0
    %375 = vmatprep.subr.mxu0 0.0
    %376 = vmatpush1.msra.mxu0 0.0
    %377 = vmatprep.subr.mxu0 0.0
    %378 = vmatpush1.msra.mxu0 0.0
    %379 = vmatprep.subr.mxu0 0.0
    %380 = vmatpush1.msra.mxu0 %v347
    %381 = vmatprep.subr.mxu0 0.0
    %382 = vmatpush2.msra.mxu0 0.0
    %383 = vmatprep.subr.mxu0 0.0
    %384 = vmatpush2.msra.mxu0 0.0
    %385 = vmatprep.subr.mxu0 0.0
    %386 = vmatpush2.msra.mxu0 0.0
    %387 = vmatprep.subr.mxu0 0.0
    %388 = vmatpush2.msra.mxu0 0.0
    %389 = vmatprep.subr.mxu0 0.0
    %390 = vmatpush2.msra.mxu0 0.0
    %391 = vmatprep.subr.mxu0 0.0
    %392 = vmatpush2.msra.mxu0 0.0
    %393 = vmatprep.subr.mxu0 0.0
    %394 = vmatpush2.msra.mxu0 0.0
    %395 = vmatprep.subr.mxu0 0.0
    %396 = vmatpush2.msra.mxu0 0.0
    %397 = vmatprep.subr.mxu0 0.0
    %398 = vmatpush2.msra.mxu0 0.0
    %399 = vmatprep.subr.mxu0 0.0
    %400 = vmatpush2.msra.mxu0 0.0
    %401 = vmatprep.subr.mxu0 0.0
    %402 = vmatpush2.msra.mxu0 0.0
    %403 = vmatprep.subr.mxu0 0.0
    %404 = vmatpush2.msra.mxu0 0.0
    %405 = vmatprep.subr.mxu0 0.0
    %406 = vmatpush2.msra.mxu0 0.0
    %407 = vmatprep.subr.mxu0 0.0
    %408 = vmatpush2.msra.mxu0 0.0
    %409 = vmatprep.subr.mxu0 0.0
    %410 = vmatpush2.msra.mxu0 0.0
    %411 = vmatprep.subr.mxu0 0.0
    %412 = vmatpush2.msra.mxu0 0.0
    %413 = vmatprep.mubr.f32.mxu0 0.0
    %414 = vmatmul.mubr.f32.gmra.mxu0 %v270
    %v415 = vpop.f32.mrf.mxu0
    %v416 = vadd.f32 %v254, %v415
    %v417 = vpop.f32.mrf.mxu0
    %418 = vdwg.mxu0
    %v419 = vadd.f32 %v343, 3.0
    %v420 = vmax.f32 %v419, 0.0
    %v421 = vmin.f32 %v420, 6.0
    %v422 = vmul.f32 %v343, %v421
    %v423 = vmul.f32 %v422, 0.16666667
    %v424 = vadd.f32 %v416, 3.0
    %v425 = vmax.f32 %v424, 0.0
    %v426 = vmin.f32 %v425, 6.0
    %v427 = vmul.f32 %v416, %v426
    %v428 = vmul.f32 %v427, 0.16666667
    %vm429 = vcmask 64512
    %v431 = vsel %vm429, %v248, 0
    %433 = vmatprep.subr.mxu0 0.0
    %434 = vmatpush1.msra.mxu0 0.0
    %435 = vmatprep.subr.mxu0 0.0
    %436 = vmatpush1.msra.mxu0 0.0
    %437 = vmatprep.subr.mxu0 0.0
    %438 = vmatpush1.msra.mxu0 0.0
    %439 = vmatprep.subr.mxu0 0.0
    %440 = vmatpush1.msra.mxu0 0.0
    %441 = vmatprep.subr.mxu0 0.0
    %442 = vmatpush1.msra.mxu0 0.0
    %443 = vmatprep.subr.mxu0 0.0
    %444 = vmatpush1.msra.mxu0 0.0
    %445 = vmatprep.subr.mxu0 0.0
    %446 = vmatpush1.msra.mxu0 0.0
    %447 = vmatprep.subr.mxu0 0.0
    %448 = vmatpush1.msra.mxu0 0.0
    %449 = vmatprep.subr.mxu0 0.0
    %450 = vmatpush1.msra.mxu0 0.0
    %451 = vmatprep.subr.mxu0 0.0
    %452 = vmatpush1.msra.mxu0 0.0
    %453 = vmatprep.subr.mxu0 0.0
    %454 = vmatpush1.msra.mxu0 0.0
    %455 = vmatprep.subr.mxu0 0.0
    %456 = vmatpush1.msra.mxu0 0.0
    %457 = vmatprep.subr.mxu0 0.0
    %458 = vmatpush1.msra.mxu0 0.0
    %459 = vmatprep.subr.mxu0 0.0
    %460 = vmatpush1.msra.mxu0 0.0
    %461 = vmatprep.subr.mxu0 0.0
    %462 = vmatpush1.msra.mxu0 0.0
    %463 = vmatprep.subr.mxu0 0.0
    %464 = vmatpush1.msra.mxu0 %v423
    %465 = vmatprep.subr.mxu0 0.0
    %466 = vmatpush2.msra.mxu0 0.0
    %467 = vmatprep.subr.mxu0 0.0
    %468 = vmatpush2.msra.mxu0 0.0
    %469 = vmatprep.subr.mxu0 0.0
    %470 = vmatpush2.msra.mxu0 0.0
    %471 = vmatprep.subr.mxu0 0.0
    %472 = vmatpush2.msra.mxu0 0.0
    %473 = vmatprep.subr.mxu0 0.0
    %474 = vmatpush2.msra.mxu0 0.0
    %475 = vmatprep.subr.mxu0 0.0
    %476 = vmatpush2.msra.mxu0 0.0
    %477 = vmatprep.subr.mxu0 0.0
    %478 = vmatpush2.msra.mxu0 0.0
    %479 = vmatprep.subr.mxu0 0.0
    %480 = vmatpush2.msra.mxu0 0.0
    %481 = vmatprep.subr.mxu0 0.0
    %482 = vmatpush2.msra.mxu0 0.0
    %483 = vmatprep.subr.mxu0 0.0
    %484 = vmatpush2.msra.mxu0 0.0
    %485 = vmatprep.subr.mxu0 0.0
    %486 = vmatpush2.msra.mxu0 0.0
    %487 = vmatprep.subr.mxu0 0.0
    %488 = vmatpush2.msra.mxu0 0.0
    %489 = vmatprep.subr.mxu0 0.0
    %490 = vmatpush2.msra.mxu0 0.0
    %491 = vmatprep.subr.mxu0 0.0
    %492 = vmatpush2.msra.mxu0 0.0
    %493 = vmatprep.subr.mxu0 0.0
    %494 = vmatpush2.msra.mxu0 0.0
    %495 = vmatprep.subr.mxu0 0.0
    %496 = vmatpush2.msra.mxu0 0.0
    %497 = vmatprep.mubr.f32.mxu0 0.0
    %498 = vmatmul.mubr.f32.gmra.mxu0 %v431
    %v499 = vpop.f32.mrf.mxu0
    %v500 = vadd.f32 %v260, %v499
    %v501 = vpop.f32.mrf.mxu0
    %502 = vdwg.mxu0
    %v504 = vsel %vm429, %v249, 0
    %506 = vmatprep.subr.mxu0 0.0
    %507 = vmatpush1.msra.mxu0 0.0
    %508 = vmatprep.subr.mxu0 0.0
    %509 = vmatpush1.msra.mxu0 0.0
    %510 = vmatprep.subr.mxu0 0.0
    %511 = vmatpush1.msra.mxu0 0.0
    %512 = vmatprep.subr.mxu0 0.0
    %513 = vmatpush1.msra.mxu0 0.0
    %514 = vmatprep.subr.mxu0 0.0
    %515 = vmatpush1.msra.mxu0 0.0
    %516 = vmatprep.subr.mxu0 0.0
    %517 = vmatpush1.msra.mxu0 0.0
    %518 = vmatprep.subr.mxu0 0.0
    %519 = vmatpush1.msra.mxu0 0.0
    %520 = vmatprep.subr.mxu0 0.0
    %521 = vmatpush1.msra.mxu0 0.0
    %522 = vmatprep.subr.mxu0 0.0
    %523 = vmatpush1.msra.mxu0 0.0
    %524 = vmatprep.subr.mxu0 0.0
    %525 = vmatpush1.msra.mxu0 0.0
    %526 = vmatprep.subr.mxu0 0.0
    %527 = vmatpush1.msra.mxu0 0.0
    %528 = vmatprep.subr.mxu0 0.0
    %529 = vmatpush1.msra.mxu0 0.0
    %530 = vmatprep.subr.mxu0 0.0
    %531 = vmatpush1.msra.mxu0 0.0
    %532 = vmatprep.subr.mxu0 0.0
    %533 = vmatpush1.msra.mxu0 0.0
    %534 = vmatprep.subr.mxu0 0.0
    %535 = vmatpush1.msra.mxu0 0.0
    %536 = vmatprep.subr.mxu0 0.0
    %537 = vmatpush1.msra.mxu0 %v428
    %538 = vmatprep.subr.mxu0 0.0
    %539 = vmatpush2.msra.mxu0 0.0
    %540 = vmatprep.subr.mxu0 0.0
    %541 = vmatpush2.msra.mxu0 0.0
    %542 = vmatprep.subr.mxu0 0.0
    %543 = vmatpush2.msra.mxu0 0.0
    %544 = vmatprep.subr.mxu0 0.0
    %545 = vmatpush2.msra.mxu0 0.0
    %546 = vmatprep.subr.mxu0 0.0
    %547 = vmatpush2.msra.mxu0 0.0
    %548 = vmatprep.subr.mxu0 0.0
    %549 = vmatpush2.msra.mxu0 0.0
    %550 = vmatprep.subr.mxu0 0.0
    %551 = vmatpush2.msra.mxu0 0.0
    %552 = vmatprep.subr.mxu0 0.0
    %553 = vmatpush2.msra.mxu0 0.0
    %554 = vmatprep.subr.mxu0 0.0
    %555 = vmatpush2.msra.mxu0 0.0
    %556 = vmatprep.subr.mxu0 0.0
    %557 = vmatpush2.msra.mxu0 0.0
    %558 = vmatprep.subr.mxu0 0.0
    %559 = vmatpush2.msra.mxu0 0.0
    %560 = vmatprep.subr.mxu0 0.0
    %561 = vmatpush2.msra.mxu0 0.0
    %562 = vmatprep.subr.mxu0 0.0
    %563 = vmatpush2.msra.mxu0 0.0
    %564 = vmatprep.subr.mxu0 0.0
    %565 = vmatpush2.msra.mxu0 0.0
    %566 = vmatprep.subr.mxu0 0.0
    %567 = vmatpush2.msra.mxu0 0.0
    %568 = vmatprep.subr.mxu0 0.0
    %569 = vmatpush2.msra.mxu0 0.0
    %570 = vmatprep.mubr.f32.mxu0 0.0
    %571 = vmatmul.mubr.f32.gmra.mxu0 %v504
    %v572 = vpop.f32.mrf.mxu0
    %v573 = vadd.f32 %v266, %v572
    %v574 = vpop.f32.mrf.mxu0
    %575 = vdwg.mxu0
    %v576 = vrot.slane %v175, 4
    %v577 = vsel %vm272, %v576, 0
    %579 = vmatprep.subr.mxu0 0.0
    %580 = vmatpush1.msra.mxu0 0.0
    %581 = vmatprep.subr.mxu0 0.0
    %582 = vmatpush1.msra.mxu0 0.0
    %583 = vmatprep.subr.mxu0 0.0
    %584 = vmatpush1.msra.mxu0 0.0
    %585 = vmatprep.subr.mxu0 0.0
    %586 = vmatpush1.msra.mxu0 0.0
    %587 = vmatprep.subr.mxu0 0.0
    %588 = vmatpush1.msra.mxu0 0.0
    %589 = vmatprep.subr.mxu0 0.0
    %590 = vmatpush1.msra.mxu0 0.0
    %591 = vmatprep.subr.mxu0 0.0
    %592 = vmatpush1.msra.mxu0 0.0
    %593 = vmatprep.subr.mxu0 0.0
    %594 = vmatpush1.msra.mxu0 0.0
    %595 = vmatprep.subr.mxu0 0.0
    %596 = vmatpush1.msra.mxu0 0.0
    %597 = vmatprep.subr.mxu0 0.0
    %598 = vmatpush1.msra.mxu0 0.0
    %599 = vmatprep.subr.mxu0 0.0
    %600 = vmatpush1.msra.mxu0 0.0
    %601 = vmatprep.subr.mxu0 0.0
    %602 = vmatpush1.msra.mxu0 0.0
    %603 = vmatprep.subr.mxu0 0.0
    %604 = vmatpush1.msra.mxu0 0.0
    %605 = vmatprep.subr.mxu0 0.0
    %606 = vmatpush1.msra.mxu0 0.0
    %607 = vmatprep.subr.mxu0 0.0
    %608 = vmatpush1.msra.mxu0 0.0
    %609 = vmatprep.subr.mxu0 0.0
    %610 = vmatpush1.msra.mxu0 %v577
    %611 = vmatprep.subr.mxu0 0.0
    %612 = vmatpush2.msra.mxu0 0.0
    %613 = vmatprep.subr.mxu0 0.0
    %614 = vmatpush2.msra.mxu0 0.0
    %615 = vmatprep.subr.mxu0 0.0
    %616 = vmatpush2.msra.mxu0 0.0
    %617 = vmatprep.subr.mxu0 0.0
    %618 = vmatpush2.msra.mxu0 0.0
    %619 = vmatprep.subr.mxu0 0.0
    %620 = vmatpush2.msra.mxu0 0.0
    %621 = vmatprep.subr.mxu0 0.0
    %622 = vmatpush2.msra.mxu0 0.0
    %623 = vmatprep.subr.mxu0 0.0
    %624 = vmatpush2.msra.mxu0 0.0
    %625 = vmatprep.subr.mxu0 0.0
    %626 = vmatpush2.msra.mxu0 0.0
    %627 = vmatprep.subr.mxu0 0.0
    %628 = vmatpush2.msra.mxu0 0.0
    %629 = vmatprep.subr.mxu0 0.0
    %630 = vmatpush2.msra.mxu0 0.0
    %631 = vmatprep.subr.mxu0 0.0
    %632 = vmatpush2.msra.mxu0 0.0
    %633 = vmatprep.subr.mxu0 0.0
    %634 = vmatpush2.msra.mxu0 0.0
    %635 = vmatprep.subr.mxu0 0.0
    %636 = vmatpush2.msra.mxu0 0.0
    %637 = vmatprep.subr.mxu0 0.0
    %638 = vmatpush2.msra.mxu0 0.0
    %639 = vmatprep.subr.mxu0 0.0
    %640 = vmatpush2.msra.mxu0 0.0
    %641 = vmatprep.subr.mxu0 0.0
    %642 = vmatpush2.msra.mxu0 0.0
    %643 = vmatprep.mubr.f32.mxu0 0.0
    %644 = vmatmul.mubr.f32.gmra.mxu0 %v270
    %v645 = vpop.f32.mrf.mxu0
    %v646 = vadd.f32 %v254, %v645
    %v647 = vpop.f32.mrf.mxu0
    %648 = vdwg.mxu0
    %v649 = vrot.slane %v246, 4
    %v650 = vsel %vm272, %v649, 0
    %652 = vmatprep.subr.mxu0 0.0
    %653 = vmatpush1.msra.mxu0 0.0
    %654 = vmatprep.subr.mxu0 0.0
    %655 = vmatpush1.msra.mxu0 0.0
    %656 = vmatprep.subr.mxu0 0.0
    %657 = vmatpush1.msra.mxu0 0.0
    %658 = vmatprep.subr.mxu0 0.0
    %659 = vmatpush1.msra.mxu0 0.0
    %660 = vmatprep.subr.mxu0 0.0
    %661 = vmatpush1.msra.mxu0 0.0
    %662 = vmatprep.subr.mxu0 0.0
    %663 = vmatpush1.msra.mxu0 0.0
    %664 = vmatprep.subr.mxu0 0.0
    %665 = vmatpush1.msra.mxu0 0.0
    %666 = vmatprep.subr.mxu0 0.0
    %667 = vmatpush1.msra.mxu0 0.0
    %668 = vmatprep.subr.mxu0 0.0
    %669 = vmatpush1.msra.mxu0 0.0
    %670 = vmatprep.subr.mxu0 0.0
    %671 = vmatpush1.msra.mxu0 0.0
    %672 = vmatprep.subr.mxu0 0.0
    %673 = vmatpush1.msra.mxu0 0.0
    %674 = vmatprep.subr.mxu0 0.0
    %675 = vmatpush1.msra.mxu0 0.0
    %676 = vmatprep.subr.mxu0 0.0
    %677 = vmatpush1.msra.mxu0 0.0
    %678 = vmatprep.subr.mxu0 0.0
    %679 = vmatpush1.msra.mxu0 0.0
    %680 = vmatprep.subr.mxu0 0.0
    %681 = vmatpush1.msra.mxu0 0.0
    %682 = vmatprep.subr.mxu0 0.0
    %683 = vmatpush1.msra.mxu0 %v650
    %684 = vmatprep.subr.mxu0 0.0
    %685 = vmatpush2.msra.mxu0 0.0
    %686 = vmatprep.subr.mxu0 0.0
    %687 = vmatpush2.msra.mxu0 0.0
    %688 = vmatprep.subr.mxu0 0.0
    %689 = vmatpush2.msra.mxu0 0.0
    %690 = vmatprep.subr.mxu0 0.0
    %691 = vmatpush2.msra.mxu0 0.0
    %692 = vmatprep.subr.mxu0 0.0
    %693 = vmatpush2.msra.mxu0 0.0
    %694 = vmatprep.subr.mxu0 0.0
    %695 = vmatpush2.msra.mxu0 0.0
    %696 = vmatprep.subr.mxu0 0.0
    %697 = vmatpush2.msra.mxu0 0.0
    %698 = vmatprep.subr.mxu0 0.0
    %699 = vmatpush2.msra.mxu0 0.0
    %700 = vmatprep.subr.mxu0 0.0
    %701 = vmatpush2.msra.mxu0 0.0
    %702 = vmatprep.subr.mxu0 0.0
    %703 = vmatpush2.msra.mxu0 0.0
    %704 = vmatprep.subr.mxu0 0.0
    %705 = vmatpush2.msra.mxu0 0.0
    %706 = vmatprep.subr.mxu0 0.0
    %707 = vmatpush2.msra.mxu0 0.0
    %708 = vmatprep.subr.mxu0 0.0
    %709 = vmatpush2.msra.mxu0 0.0
    %710 = vmatprep.subr.mxu0 0.0
    %711 = vmatpush2.msra.mxu0 0.0
    %712 = vmatprep.subr.mxu0 0.0
    %713 = vmatpush2.msra.mxu0 0.0
    %714 = vmatprep.subr.mxu0 0.0
    %715 = vmatpush2.msra.mxu0 0.0
    %716 = vmatprep.mubr.f32.mxu0 0.0
    %717 = vmatmul.mubr.f32.gmra.mxu0 %v270
    %v718 = vpop.f32.mrf.mxu0
    %v719 = vadd.f32 %v254, %v718
    %v720 = vpop.f32.mrf.mxu0
    %721 = vdwg.mxu0
    %v722 = vadd.f32 %v646, 3.0
    %v723 = vmax.f32 %v722, 0.0
    %v724 = vmin.f32 %v723, 6.0
    %v725 = vmul.f32 %v646, %v724
    %v726 = vmul.f32 %v725, 0.16666667
    %v727 = vadd.f32 %v719, 3.0
    %v728 = vmax.f32 %v727, 0.0
    %v729 = vmin.f32 %v728, 6.0
    %v730 = vmul.f32 %v719, %v729
    %v731 = vmul.f32 %v730, 0.16666667
    %732 = vmatprep.subr.mxu0 0.0
    %733 = vmatpush1.msra.mxu0 0.0
    %734 = vmatprep.subr.mxu0 0.0
    %735 = vmatpush1.msra.mxu0 0.0
    %736 = vmatprep.subr.mxu0 0.0
    %737 = vmatpush1.msra.mxu0 0.0
    %738 = vmatprep.subr.mxu0 0.0
    %739 = vmatpush1.msra.mxu0 0.0
    %740 = vmatprep.subr.mxu0 0.0
    %741 = vmatpush1.msra.mxu0 0.0
    %742 = vmatprep.subr.mxu0 0.0
    %743 = vmatpush1.msra.mxu0 0.0
    %744 = vmatprep.subr.mxu0 0.0
    %745 = vmatpush1.msra.mxu0 0.0
    %746 = vmatprep.subr.mxu0 0.0
    %747 = vmatpush1.msra.mxu0 0.0
    %748 = vmatprep.subr.mxu0 0.0
    %749 = vmatpush1.msra.mxu0 0.0
    %750 = vmatprep.subr.mxu0 0.0
    %751 = vmatpush1.msra.mxu0 0.0
    %752 = vmatprep.subr.mxu0 0.0
    %753 = vmatpush1.msra.mxu0 0.0
    %754 = vmatprep.subr.mxu0 0.0
    %755 = vmatpush1.msra.mxu0 0.0
    %756 = vmatprep.subr.mxu0 0.0
    %757 = vmatpush1.msra.mxu0 0.0
    %758 = vmatprep.subr.mxu0 0.0
    %759 = vmatpush1.msra.mxu0 0.0
    %760 = vmatprep.subr.mxu0 0.0
    %761 = vmatpush1.msra.mxu0 0.0
    %762 = vmatprep.subr.mxu0 0.0
    %763 = vmatpush1.msra.mxu0 %v726
    %764 = vmatprep.subr.mxu0 0.0
    %765 = vmatpush2.msra.mxu0 0.0
    %766 = vmatprep.subr.mxu0 0.0
    %767 = vmatpush2.msra.mxu0 0.0
    %768 = vmatprep.subr.mxu0 0.0
    %769 = vmatpush2.msra.mxu0 0.0
    %770 = vmatprep.subr.mxu0 0.0
    %771 = vmatpush2.msra.mxu0 0.0
    %772 = vmatprep.subr.mxu0 0.0
    %773 = vmatpush2.msra.mxu0 0.0
    %774 = vmatprep.subr.mxu0 0.0
    %775 = vmatpush2.msra.mxu0 0.0
    %776 = vmatprep.subr.mxu0 0.0
    %777 = vmatpush2.msra.mxu0 0.0
    %778 = vmatprep.subr.mxu0 0.0
    %779 = vmatpush2.msra.mxu0 0.0
    %780 = vmatprep.subr.mxu0 0.0
    %781 = vmatpush2.msra.mxu0 0.0
    %782 = vmatprep.subr.mxu0 0.0
    %783 = vmatpush2.msra.mxu0 0.0
    %784 = vmatprep.subr.mxu0 0.0
    %785 = vmatpush2.msra.mxu0 0.0
    %786 = vmatprep.subr.mxu0 0.0
    %787 = vmatpush2.msra.mxu0 0.0
    %788 = vmatprep.subr.mxu0 0.0
    %789 = vmatpush2.msra.mxu0 0.0
    %790 = vmatprep.subr.mxu0 0.0
    %791 = vmatpush2.msra.mxu0 0.0
    %792 = vmatprep.subr.mxu0 0.0
    %793 = vmatpush2.msra.mxu0 0.0
    %794 = vmatprep.subr.mxu0 0.0
    %795 = vmatpush2.msra.mxu0 0.0
    %796 = vmatprep.mubr.f32.mxu0 0.0
    %797 = vmatmul.mubr.f32.gmra.mxu0 %v431
    %v798 = vpop.f32.mrf.mxu0
    %v799 = vadd.f32 %v260, %v798
    %v800 = vpop.f32.mrf.mxu0
    %801 = vdwg.mxu0
    %802 = vmatprep.subr.mxu0 0.0
    %803 = vmatpush1.msra.mxu0 0.0
    %804 = vmatprep.subr.mxu0 0.0
    %805 = vmatpush1.msra.mxu0 0.0
    %806 = vmatprep.subr.mxu0 0.0
    %807 = vmatpush1.msra.mxu0 0.0
    %808 = vmatprep.subr.mxu0 0.0
    %809 = vmatpush1.msra.mxu0 0.0
    %810 = vmatprep.subr.mxu0 0.0
    %811 = vmatpush1.msra.mxu0 0.0
    %812 = vmatprep.subr.mxu0 0.0
    %813 = vmatpush1.msra.mxu0 0.0
    %814 = vmatprep.subr.mxu0 0.0
    %815 = vmatpush1.msra.mxu0 0.0
    %816 = vmatprep.subr.mxu0 0.0
    %817 = vmatpush1.msra.mxu0 0.0
    %818 = vmatprep.subr.mxu0 0.0
    %819 = vmatpush1.msra.mxu0 0.0
    %820 = vmatprep.subr.mxu0 0.0
    %821 = vmatpush1.msra.mxu0 0.0
    %822 = vmatprep.subr.mxu0 0.0
    %823 = vmatpush1.msra.mxu0 0.0
    %824 = vmatprep.subr.mxu0 0.0
    %825 = vmatpush1.msra.mxu0 0.0
    %826 = vmatprep.subr.mxu0 0.0
    %827 = vmatpush1.msra.mxu0 0.0
    %828 = vmatprep.subr.mxu0 0.0
    %829 = vmatpush1.msra.mxu0 0.0
    %830 = vmatprep.subr.mxu0 0.0
    %831 = vmatpush1.msra.mxu0 0.0
    %832 = vmatprep.subr.mxu0 0.0
    %833 = vmatpush1.msra.mxu0 %v731
    %834 = vmatprep.subr.mxu0 0.0
    %835 = vmatpush2.msra.mxu0 0.0
    %836 = vmatprep.subr.mxu0 0.0
    %837 = vmatpush2.msra.mxu0 0.0
    %838 = vmatprep.subr.mxu0 0.0
    %839 = vmatpush2.msra.mxu0 0.0
    %840 = vmatprep.subr.mxu0 0.0
    %841 = vmatpush2.msra.mxu0 0.0
    %842 = vmatprep.subr.mxu0 0.0
    %843 = vmatpush2.msra.mxu0 0.0
    %844 = vmatprep.subr.mxu0 0.0
    %845 = vmatpush2.msra.mxu0 0.0
    %846 = vmatprep.subr.mxu0 0.0
    %847 = vmatpush2.msra.mxu0 0.0
    %848 = vmatprep.subr.mxu0 0.0
    %849 = vmatpush2.msra.mxu0 0.0
    %850 = vmatprep.subr.mxu0 0.0
    %851 = vmatpush2.msra.mxu0 0.0
    %852 = vmatprep.subr.mxu0 0.0
    %853 = vmatpush2.msra.mxu0 0.0
    %854 = vmatprep.subr.mxu0 0.0
    %855 = vmatpush2.msra.mxu0 0.0
    %856 = vmatprep.subr.mxu0 0.0
    %857 = vmatpush2.msra.mxu0 0.0
    %858 = vmatprep.subr.mxu0 0.0
    %859 = vmatpush2.msra.mxu0 0.0
    %860 = vmatprep.subr.mxu0 0.0
    %861 = vmatpush2.msra.mxu0 0.0
    %862 = vmatprep.subr.mxu0 0.0
    %863 = vmatpush2.msra.mxu0 0.0
    %864 = vmatprep.subr.mxu0 0.0
    %865 = vmatpush2.msra.mxu0 0.0
    %866 = vmatprep.mubr.f32.mxu0 0.0
    %867 = vmatmul.mubr.f32.gmra.mxu0 %v504
    %v868 = vpop.f32.mrf.mxu0
    %v869 = vadd.f32 %v266, %v868
    %v870 = vpop.f32.mrf.mxu0
    %871 = vdwg.mxu0
    %v873 = vrot.slane %v799, 4
    %v875 = vsel %vm272, %v500, %v873
    %v877 = vrot.slane %v869, 4
    %v879 = vsel %vm272, %v573, %v877
    %v880 = vld [vmem:[%s3] sm:$0xff]
    %v881 = vld [vmem:[%s3 + $0x8] sm:$0xff]
    %v882 = vld [vmem:[%s3 + $0x10] sm:$0xff]
    %v883 = vld [vmem:[%s3 + $0x18] sm:$0xff]
    %v884 = vld [vmem:[%s4] sm:$0xff]
    %v885 = vld [vmem:[%s4 + $0x8] sm:$0xff]
    %v886 = vld [vmem:[%s4 + $0x10] sm:$0xff]
    %v887 = vld [vmem:[%s4 + $0x18] sm:$0xff]
    %vm888 = vcmask 130048
    %v890 = vsel %vm888, %v879, 0
    %892 = vmatprep.subr.mxu0 0.0
    %893 = vmatpush1.msra.mxu0 0.0
    %894 = vmatprep.subr.mxu0 0.0
    %895 = vmatpush1.msra.mxu0 0.0
    %896 = vmatprep.subr.mxu0 0.0
    %897 = vmatpush1.msra.mxu0 0.0
    %898 = vmatprep.subr.mxu0 0.0
    %899 = vmatpush1.msra.mxu0 0.0
    %900 = vmatprep.subr.mxu0 0.0
    %901 = vmatpush1.msra.mxu0 0.0
    %902 = vmatprep.subr.mxu0 0.0
    %903 = vmatpush1.msra.mxu0 0.0
    %904 = vmatprep.subr.mxu0 0.0
    %905 = vmatpush1.msra.mxu0 0.0
    %906 = vmatprep.subr.mxu0 0.0
    %907 = vmatpush1.msra.mxu0 0.0
    %908 = vmatprep.subr.mxu0 0.0
    %909 = vmatpush1.msra.mxu0 0.0
    %910 = vmatprep.subr.mxu0 0.0
    %911 = vmatpush1.msra.mxu0 0.0
    %912 = vmatprep.subr.mxu0 0.0
    %913 = vmatpush1.msra.mxu0 0.0
    %914 = vmatprep.subr.mxu0 0.0
    %915 = vmatpush1.msra.mxu0 0.0
    %916 = vmatprep.subr.mxu0 0.0
    %917 = vmatpush1.msra.mxu0 0.0
    %918 = vmatprep.subr.mxu0 0.0
    %919 = vmatpush1.msra.mxu0 0.0
    %920 = vmatprep.subr.mxu0 %v887
    %921 = vmatpush1.msra.mxu0 %v886
    %922 = vmatprep.subr.mxu0 %v885
    %923 = vmatpush1.msra.mxu0 %v884
    %924 = vmatprep.subr.mxu0 0.0
    %925 = vmatpush2.msra.mxu0 0.0
    %926 = vmatprep.subr.mxu0 0.0
    %927 = vmatpush2.msra.mxu0 0.0
    %928 = vmatprep.subr.mxu0 0.0
    %929 = vmatpush2.msra.mxu0 0.0
    %930 = vmatprep.subr.mxu0 0.0
    %931 = vmatpush2.msra.mxu0 0.0
    %932 = vmatprep.subr.mxu0 0.0
    %933 = vmatpush2.msra.mxu0 0.0
    %934 = vmatprep.subr.mxu0 0.0
    %935 = vmatpush2.msra.mxu0 0.0
    %936 = vmatprep.subr.mxu0 0.0
    %937 = vmatpush2.msra.mxu0 0.0
    %938 = vmatprep.subr.mxu0 0.0
    %939 = vmatpush2.msra.mxu0 0.0
    %940 = vmatprep.subr.mxu0 0.0
    %941 = vmatpush2.msra.mxu0 0.0
    %942 = vmatprep.subr.mxu0 0.0
    %943 = vmatpush2.msra.mxu0 0.0
    %944 = vmatprep.subr.mxu0 0.0
    %945 = vmatpush2.msra.mxu0 0.0
    %946 = vmatprep.subr.mxu0 0.0
    %947 = vmatpush2.msra.mxu0 0.0
    %948 = vmatprep.subr.mxu0 0.0
    %949 = vmatpush2.msra.mxu0 0.0
    %950 = vmatprep.subr.mxu0 0.0
    %951 = vmatpush2.msra.mxu0 0.0
    %952 = vmatprep.subr.mxu0 0.0
    %953 = vmatpush2.msra.mxu0 0.0
    %954 = vmatprep.subr.mxu0 0.0
    %955 = vmatpush2.msra.mxu0 0.0
    %956 = vmatprep.mubr.f32.mxu0 0.0
    %957 = vmatmul.mubr.f32.gmra.mxu0 %v890
    %v958 = vpop.f32.mrf.mxu0
    %v959 = vadd.f32 0.0, %v958
    %v960 = vpop.f32.mrf.mxu0
    %v961 = vadd.f32 0.0, %v960
    %962 = vdwg.mxu0
    %v964 = vsel %vm888, %v875, 0
    %966 = vmatprep.subr.mxu0 0.0
    %967 = vmatpush1.msra.mxu0 0.0
    %968 = vmatprep.subr.mxu0 0.0
    %969 = vmatpush1.msra.mxu0 0.0
    %970 = vmatprep.subr.mxu0 0.0
    %971 = vmatpush1.msra.mxu0 0.0
    %972 = vmatprep.subr.mxu0 0.0
    %973 = vmatpush1.msra.mxu0 0.0
    %974 = vmatprep.subr.mxu0 0.0
    %975 = vmatpush1.msra.mxu0 0.0
    %976 = vmatprep.subr.mxu0 0.0
    %977 = vmatpush1.msra.mxu0 0.0
    %978 = vmatprep.subr.mxu0 0.0
    %979 = vmatpush1.msra.mxu0 0.0
    %980 = vmatprep.subr.mxu0 0.0
    %981 = vmatpush1.msra.mxu0 0.0
    %982 = vmatprep.subr.mxu0 0.0
    %983 = vmatpush1.msra.mxu0 0.0
    %984 = vmatprep.subr.mxu0 0.0
    %985 = vmatpush1.msra.mxu0 0.0
    %986 = vmatprep.subr.mxu0 0.0
    %987 = vmatpush1.msra.mxu0 0.0
    %988 = vmatprep.subr.mxu0 0.0
    %989 = vmatpush1.msra.mxu0 0.0
    %990 = vmatprep.subr.mxu0 0.0
    %991 = vmatpush1.msra.mxu0 0.0
    %992 = vmatprep.subr.mxu0 0.0
    %993 = vmatpush1.msra.mxu0 0.0
    %994 = vmatprep.subr.mxu0 %v883
    %995 = vmatpush1.msra.mxu0 %v882
    %996 = vmatprep.subr.mxu0 %v881
    %997 = vmatpush1.msra.mxu0 %v880
    %998 = vmatprep.subr.mxu0 0.0
    %999 = vmatpush2.msra.mxu0 0.0
    %1000 = vmatprep.subr.mxu0 0.0
    %1001 = vmatpush2.msra.mxu0 0.0
    %1002 = vmatprep.subr.mxu0 0.0
    %1003 = vmatpush2.msra.mxu0 0.0
    %1004 = vmatprep.subr.mxu0 0.0
    %1005 = vmatpush2.msra.mxu0 0.0
    %1006 = vmatprep.subr.mxu0 0.0
    %1007 = vmatpush2.msra.mxu0 0.0
    %1008 = vmatprep.subr.mxu0 0.0
    %1009 = vmatpush2.msra.mxu0 0.0
    %1010 = vmatprep.subr.mxu0 0.0
    %1011 = vmatpush2.msra.mxu0 0.0
    %1012 = vmatprep.subr.mxu0 0.0
    %1013 = vmatpush2.msra.mxu0 0.0
    %1014 = vmatprep.subr.mxu0 0.0
    %1015 = vmatpush2.msra.mxu0 0.0
    %1016 = vmatprep.subr.mxu0 0.0
    %1017 = vmatpush2.msra.mxu0 0.0
    %1018 = vmatprep.subr.mxu0 0.0
    %1019 = vmatpush2.msra.mxu0 0.0
    %1020 = vmatprep.subr.mxu0 0.0
    %1021 = vmatpush2.msra.mxu0 0.0
    %1022 = vmatprep.subr.mxu0 0.0
    %1023 = vmatpush2.msra.mxu0 0.0
    %1024 = vmatprep.subr.mxu0 0.0
    %1025 = vmatpush2.msra.mxu0 0.0
    %1026 = vmatprep.subr.mxu0 0.0
    %1027 = vmatpush2.msra.mxu0 0.0
    %1028 = vmatprep.subr.mxu0 0.0
    %1029 = vmatpush2.msra.mxu0 0.0
    %1030 = vmatprep.mubr.f32.mxu0 0.0
    %1031 = vmatmul.mubr.f32.gmra.mxu0 %v964
    %v1032 = vpop.f32.mrf.mxu0
    %v1033 = vadd.f32 %v959, %v1032
    %v1034 = vpop.f32.mrf.mxu0
    %v1035 = vadd.f32 %v961, %v1034
    %1036 = vdwg.mxu0
    %v1037 = vxor.u32 %v1033, 2147483648
    %v1038 = vxor.u32 %v1035, 2147483648
    %v1039 = vmul.f32 %v1037, 1.442695
    %v1040 = vpow.pop %v1039
    %v1041 = vmul.f32 %v1038, 1.442695
    %v1042 = vpow.pop %v1041
    %v1043 = vadd.f32 %v1040, 1.0
    %v1044 = vadd.f32 %v1042, 1.0
    %v1045 = vrcp.pop %v1043
    %v1046 = vmul.f32 1.0, %v1045
    %v1047 = vrcp.pop %v1044
    %v1048 = vmul.f32 1.0, %v1047
    %1049 = vst [vmem:[#allocation2] sm:$0xff] %v1046
    %1050 = vst [vmem:[#allocation2 + $0x8] sm:$0xff] %v1048
    // Predicated region
    $region46: #{tpu_custom_call.1} parent=1 // pred_check
      _
    $region47: #{tpu_custom_call.1} parent=1 // pred_check_branch
      %1052 = sbr.rel (0) target = $region49
    $region48: #{tpu_custom_call.1} parent=1 // pred_region
      %s1054 = ssub.s32 256, 256
      %1055 = vsyncadd [#allocation3], %s1054
      %s1057 = sshll.u32 [#allocation2], 4
      %s1058 = int_to_ptr.vmem [resolvable:$true] %s1057
      %1060 = dma.vmem_to_hbm [thread:$0]  %s1058, 256, %s11, [#allocation3]
    $region49: #{tpu_custom_call.1} parent=1 // pred_fallthru
      _
    // Predicated region
    $region50: #{tpu_custom_call.1} parent=1 // pred_check
      _
    $region51: #{tpu_custom_call.1} parent=1 // pred_check_branch
      %1062 = sbr.rel (0) target = $region53
    $region52: #{tpu_custom_call.1} parent=1 // pred_region
      %1063 = dma.done [#allocation3], 256
    $region53: #{tpu_custom_call.1} parent=1 // pred_fallthru
      _
    %1064 = vsyncpa [#allocation3], 1

</llo_original>
